<compile_context>
chip_gen: v5e
topology: v5e:2x2
jax: 0.10.0
libtpu: 0.0.40
codegen_flags: <defaults>
</compile_context>

<pallas_src>
import jax
import jax.numpy as jnp
from jax.experimental import pallas as pl
from jax.experimental.pallas import tpu as pltpu


def _round_up(x, m):
    return (x + m - 1) // m * m


def _cdiv(a, b):
    return (a + b - 1) // b


def _tpu_info():
    try:
        return pltpu.get_tpu_info()
    except Exception:  # hardware probe only; safe fallback below
        return None


def _vmem_budget_bytes():
    info = _tpu_info()
    cap = int(getattr(info, "vmem_capacity_bytes", 0) or 0) if info is not None else 0
    if cap <= 0:
        cap = 128 * 1024 * 1024          # v5e/v6e physical VMEM
    return cap * 3 // 4                  # ~0.75x physical (96 MiB v5e/v6e, 48 MiB v7x)


def _num_tensorcores():
    info = _tpu_info()
    if info is None:
        return 1
    return int(getattr(info, "num_cores", 1) or 1)


def _symbolic_predictor_kernel(scalars_ref, x_ref, w1_ref, b1_ref, w2_ref,
                               b2_ref, out_ref, h_ref):
    # scalars_ref (SMEM, f32[3]) = [coef, b, c] where
    #   coef = (softmax(route)[0] - softmax(route)[1]) * weight * a
    j = pl.program_id(1)

    # The hidden activation depends only on the row tile: compute it once per row
    # tile (first vocab tile) into VMEM scratch and reuse it for every vocab tile.
    @pl.when(j == 0)
    def _():
        coef = scalars_ref[0]
        b = scalars_ref[1]
        c = scalars_ref[2]
        x = x_ref[...]                                    # (tm, E) f32
        # SymbolicTerm('sin'): clamp + a*sin(b*x+c), routed fwd/bwd (f32 VPU/EUP).
        xs = jnp.clip(x, 1e-6, 1e6)
        xt = x + coef * jnp.sin(b * xs + c)
        # TokenSelector first Linear(E->H) + ReLU; bf16 operands, f32 accumulation.
        h = jnp.dot(xt.astype(jnp.bfloat16), w1_ref[...],
                    preferred_element_type=jnp.float32) + b1_ref[...]
        h_ref[...] = jnp.maximum(h, 0.0).astype(h_ref.dtype)

    # Second Linear(H->tv) for the current vocab tile.
    logits = jnp.dot(h_ref[...], w2_ref[...],
                     preferred_element_type=jnp.float32) + b2_ref[...]
    out_ref[...] = logits.astype(out_ref.dtype)


def prepare_params(params, *, tv_max=2048, out_dtype=jnp.float32):
    """One-time parameter preparation (hoisted out of the per-call hot path).

    Casts the MLP weights to bf16 (half the DMA bytes / VMEM, 2x MXU throughput;
    accumulation stays f32), pads W2/b2 along the vocab axis to a lane-dense tile
    multiple, and folds the SymbolicTerm scalars into [coef, b, c].
    """
    rw = jax.nn.softmax(params["route"].astype(jnp.float32))
    coef = (rw[0] - rw[1]) * params["weight"][0] * params["a"][0]
    scalars = jnp.stack([coef, params["b"][0], params["c"][0]]).astype(jnp.float32)

    w1 = params["w1"].astype(jnp.bfloat16)                 # (E, H)
    b1 = params["b1"].reshape(1, -1).astype(jnp.float32)   # (1, H)
    E, H = params["w1"].shape
    V = params["w2"].shape[1]

    budget = _vmem_budget_bytes()
    tv = min(tv_max, _round_up(V, 128))
    if tv >= 256:
        tv = tv // 256 * 256        # match the 256-wide MXU on v6e/v7x
    # Keep the double-buffered W2/b2 tiles to at most ~1/3 of the VMEM budget.
    while tv > 256 and 2 * (H * tv * 2 + tv * 4) > budget // 3:
        tv //= 2
    tv = max(128, tv // 128 * 128)
    V_pad = _round_up(V, tv)

    w2 = params["w2"].astype(jnp.bfloat16)                 # (H, V)
    b2 = params["b2"].reshape(1, -1).astype(jnp.float32)   # (1, V)
    if V_pad != V:
        w2 = jnp.pad(w2, ((0, 0), (0, V_pad - V)))
        b2 = jnp.pad(b2, ((0, 0), (0, V_pad - V)))

    return {
        "embedding": params["embedding"],
        "scalars": scalars,
        "w1": w1, "b1": b1, "w2": w2, "b2": b2,
        "E": E, "H": H, "V": V, "V_pad": V_pad, "tv": tv,
        "out_dtype": out_dtype,
    }


def _choose_tm(M, E, H, tv, out_bytes, tm_max):
    budget = int(_vmem_budget_bytes() * 0.8)
    # tm-independent VMEM: W1/b1 (worst case double-buffered) + W2/b2 double bufs.
    fixed = 2 * (E * H * 2 + H * 4) + 2 * (H * tv * 2 + tv * 4) + (64 << 10)
    # Per-row VMEM: x double buffer (f32) + out double buffer + bf16 h scratch.
    per_row = 2 * E * 4 + 2 * tv * out_bytes + H * 2
    tm_cap = min(tm_max, _round_up(M, 8))
    tm = tm_cap
    while tm > 16 and fixed + tm * per_row > budget:
        tm = max(16, tm // 2)
    # Prefer multiples of 16 (bf16 sublane packing) when the cap allows it.
    if tm % 16 != 0 and _round_up(tm, 16) <= tm_cap:
        tm = _round_up(tm, 16)
    # v7x: 2 TensorCores per chip -> give the (parallel) row axis at least one
    # tile per core so no core idles. (No effect on single-core v5e/v6e.)
    cores = _num_tensorcores()
    if cores > 1 and M >= 16 * cores:
        tm = min(tm, _round_up(_cdiv(M, cores), 16))
    return max(8, min(tm, tm_cap))


def symbolic_token_predictor(input_ids, params, *, tm_max=2048):
    """Forward pass. `params` may be the raw parameter dict or the result of
    prepare_params(); for repeated calls, prepare once and pass the prepared dict."""
    prepared = params if "scalars" in params else prepare_params(params)

    emb = prepared["embedding"]
    # TODO(synk): fuse the embedding gather into the kernel (ids via scalar
    # prefetch + manual DMA gather from the HBM-resident table) to remove the
    # x=(M,E) HBM round trip; kept in the wrapper for robustness.
    x = emb[input_ids]                                     # (B, T, E) f32
    B, T, E = x.shape
    M = B * T
    x2 = x.reshape(M, E)

    scalars = prepared["scalars"]
    w1, b1, w2, b2 = prepared["w1"], prepared["b1"], prepared["w2"], prepared["b2"]
    H, V, V_pad, tv = prepared["H"], prepared["V"], prepared["V_pad"], prepared["tv"]
    out_dtype = prepared["out_dtype"]
    out_bytes = jnp.dtype(out_dtype).itemsize
    assert E == prepared["E"], "embedding dim mismatch between ids and params"

    tm = _choose_tm(M, E, H, tv, out_bytes, tm_max)
    M_pad = _round_up(M, tm)
    if M_pad != M:
        x2 = jnp.pad(x2, ((0, M_pad - M), (0, 0)))

    grid = (M_pad // tm, V_pad // tv)
    vmem_limit = int(_vmem_budget_bytes())

    cost = pl.CostEstimate(
        flops=2 * M_pad * (E * H + H * V_pad),
        transcendentals=M_pad * E,
        bytes_accessed=(M_pad * E * 4                            # x
                        + E * H * 2 + H * 4                      # W1 / b1
                        + grid[0] * (H * V_pad * 2 + V_pad * 4)  # W2/b2 re-streamed
                        + M_pad * V_pad * out_bytes),            # logits
    )

    def build(single_buffer_weights):
        if single_buffer_weights:
            # Grid-invariant weights: never re-fetched, so double buffering only
            # wastes VMEM -> request a single buffer.
            w1_spec = pl.BlockSpec((E, H), lambda i, j: (0, 0),
                                   pipeline_mode=pl.Buffered(1))
            b1_spec = pl.BlockSpec((1, H), lambda i, j: (0, 0),
                                   pipeline_mode=pl.Buffered(1))
        else:
            w1_spec = pl.BlockSpec((E, H), lambda i, j: (0, 0))
            b1_spec = pl.BlockSpec((1, H), lambda i, j: (0, 0))
        return pl.pallas_call(
            _symbolic_predictor_kernel,
            out_shape=jax.ShapeDtypeStruct((M_pad, V_pad), out_dtype),
            grid_spec=pltpu.PrefetchScalarGridSpec(
                num_scalar_prefetch=0,
                grid=grid,
                in_specs=[
                    pl.BlockSpec(memory_space=pltpu.MemorySpace.SMEM),  # scalars
                    pl.BlockSpec((tm, E), lambda i, j: (i, 0)),         # x row tile
                    w1_spec,                                            # W1 (resident)
                    b1_spec,                                            # b1 (resident)
                    pl.BlockSpec((H, tv), lambda i, j: (0, j)),         # W2 vocab tile
                    pl.BlockSpec((1, tv), lambda i, j: (0, j)),         # b2 vocab tile
                ],
                out_specs=pl.BlockSpec((tm, tv), lambda i, j: (i, j)),
                scratch_shapes=[pltpu.VMEM((tm, H), jnp.bfloat16)],     # h stash
            ),
            # The vocab axis must stay sequential/innermost ("arbitrary"): the
            # j == 0 step fills the h scratch that later vocab tiles reuse.
            # TODO(synk): on v7x, switch the row axis to pltpu.CORE_PARALLEL if
            # plain "parallel" is measured not to shard across the 2 TensorCores.
            compiler_params=pltpu.CompilerParams(
                dimension_semantics=("parallel", "arbitrary"),
                vmem_limit_bytes=vmem_limit),
            cost_estimate=cost,
        )

    try:
        logits = build(True)(scalars, x2, w1, b1, w2, b2)
    except (TypeError, NotImplementedError, pltpu.LoweringException):
        # pl.Buffered(1) (single-buffered grid-invariant inputs) unsupported on
        # this jax/Mosaic version -> fall back to default double buffering.
        logits = build(False)(scalars, x2, w1, b1, w2, b2)

    return logits[:M, :V].reshape(B, T, V)


def init_params(key, vocab_size, embed_dim):
    hidden = embed_dim // 2
    ks = jax.random.split(key, 10)
    return {
        "embedding": jax.random.normal(ks[0], (vocab_size, embed_dim), jnp.float32),
        # SymbolicTerm scalar params
        "a": jax.random.normal(ks[1], (1,), jnp.float32),
        "b": jax.random.normal(ks[2], (1,), jnp.float32),
        "c": jax.random.normal(ks[3], (1,), jnp.float32),
        "weight": jax.random.normal(ks[4], (1,), jnp.float32),
        "route": jax.random.normal(ks[5], (3,), jnp.float32),
        # TokenSelector (Linear weights stored as (in, out))
        "w1": 0.1 * jax.random.normal(ks[6], (embed_dim, hidden), jnp.float32),
        "b1": 0.1 * jax.random.normal(ks[7], (hidden,), jnp.float32),
        "w2": 0.1 * jax.random.normal(ks[8], (hidden, vocab_size), jnp.float32),
        "b2": 0.1 * jax.random.normal(ks[9], (vocab_size,), jnp.float32),
    }


def _reference(input_ids, params):
    # Pure-JAX (f32) reference of the PyTorch forward; the per-timestep loop
    # collapses to a batched elementwise + MLP since there is no cross-step state.
    x = params["embedding"][input_ids]
    rw = jax.nn.softmax(params["route"])
    coef = (rw[0] - rw[1]) * params["weight"][0] * params["a"][0]
    xs = jnp.clip(x, 1e-6, 1e6)
    xt = x + coef * jnp.sin(params["b"][0] * xs + params["c"][0])
    h = jnp.maximum(xt @ params["w1"] + params["b1"], 0.0)
    return h @ params["w2"] + params["b2"]


if __name__ == "__main__":
    # Config 1: single row tile / single vocab tile.
    vocab_size = 64
    seq_length = 8
    batch = 2
    embed_dim = 32

    key = jax.random.PRNGKey(0)
    k_ids, k_par = jax.random.split(key)
    input_ids = jax.random.randint(k_ids, (batch, seq_length), 0, vocab_size,
                                   dtype=jnp.int32)
    params = init_params(k_par, vocab_size, embed_dim)

    prepared = prepare_params(params)    # one-time weight prep (hoisted out of call)
    out = symbolic_token_predictor(input_ids, prepared)
    out = jax.block_until_ready(out)
    assert out.shape == (batch, seq_length, vocab_size)
    ref = _reference(input_ids, params)
    # bf16 matmul operands (f32 accumulation) vs the pure-f32 reference.
    assert jnp.allclose(out, ref, atol=5e-2, rtol=5e-2), "mismatch vs JAX reference"

    # Config 2: multiple row tiles AND multiple vocab tiles -> exercises the
    # h-scratch reuse across the vocab axis and the row-tile padding paths.
    vocab_size2 = 256
    batch2 = 4
    params2 = init_params(jax.random.PRNGKey(1), vocab_size2, embed_dim)
    prepared2 = prepare_params(params2, tv_max=128)
    input_ids2 = jax.random.randint(jax.random.PRNGKey(2), (batch2, seq_length),
                                    0, vocab_size2, dtype=jnp.int32)
    out2 = symbolic_token_predictor(input_ids2, prepared2, tm_max=16)
    out2 = jax.block_until_ready(out2)
    assert out2.shape == (batch2, seq_length, vocab_size2)
    ref2 = _reference(input_ids2, params2)
    assert jnp.allclose(out2, ref2, atol=5e-2, rtol=5e-2), "mismatch (tiled config)"

    print("KERNEL_OK")
</pallas_src>

<mosaic_0001>
module attributes {stable_mosaic.version = 11 : i64} {
  func.func @_symbolic_predictor_kernel(%arg0: i32, %arg1: i32, %arg2: memref<3xf32, #tpu.memory_space<smem>>, %arg3: memref<16x32xf32, #tpu.memory_space<vmem>>, %arg4: memref<32x16xbf16, #tpu.memory_space<vmem>>, %arg5: memref<1x16xf32, #tpu.memory_space<vmem>>, %arg6: memref<16x128xbf16, #tpu.memory_space<vmem>>, %arg7: memref<1x128xf32, #tpu.memory_space<vmem>>, %arg8: memref<16x128xf32, #tpu.memory_space<vmem>>, %arg9: memref<16x16xbf16, #tpu.memory_space<vmem>>) attributes {dimension_semantics = [#tpu.dimension_semantics<parallel>, #tpu.dimension_semantics<arbitrary>], iteration_bounds = array<i64: 1, 1>, scalar_prefetch = 0 : i64, scratch_operands = 1 : i64, tpu.core_type = #tpu.core_type<tc>, window_params = [{transform_indices = @transform_0, window_bounds = array<i64: 3>}, {transform_indices = @transform_1, window_bounds = array<i64: 16, 32>}, {pipeline_mode = #tpu.pipeline_mode<synchronous>, transform_indices = @transform_2, window_bounds = array<i64: 32, 16>}, {pipeline_mode = #tpu.pipeline_mode<synchronous>, transform_indices = @transform_3, window_bounds = array<i64: 1, 16>}, {transform_indices = @transform_4, window_bounds = array<i64: 16, 128>}, {transform_indices = @transform_5, window_bounds = array<i64: 1, 128>}, {transform_indices = @transform_6, window_bounds = array<i64: 16, 128>}]} {
    %c0_i32 = arith.constant 0 : i32
    %0 = arith.cmpi eq, %arg1, %c0_i32 : i32
    %1 = arith.extui %0 : i1 to i32
    %c0_i32_0 = arith.constant 0 : i32
    %2 = arith.cmpi ne, %1, %c0_i32_0 : i32
    scf.if %2 {
      %c0_8 = arith.constant 0 : index
      %10 = memref.load %arg2[%c0_8] : memref<3xf32, #tpu.memory_space<smem>>
      %c1 = arith.constant 1 : index
      %11 = memref.load %arg2[%c1] : memref<3xf32, #tpu.memory_space<smem>>
      %c2 = arith.constant 2 : index
      %12 = memref.load %arg2[%c2] : memref<3xf32, #tpu.memory_space<smem>>
      %c0_9 = arith.constant 0 : index
      %c0_10 = arith.constant 0 : index
      %13 = vector.load %arg3[%c0_9, %c0_10] : memref<16x32xf32, #tpu.memory_space<vmem>>, vector<16x32xf32>
      %cst_11 = arith.constant 9.99999997E-7 : f32
      %cst_12 = arith.constant 1.000000e+06 : f32
      %14 = vector.broadcast %cst_11 : f32 to vector<16x32xf32>
      %15 = arith.maximumf %14, %13 : vector<16x32xf32>
      %16 = vector.broadcast %cst_12 : f32 to vector<16x32xf32>
      %17 = arith.minimumf %16, %15 : vector<16x32xf32>
      %18 = vector.broadcast %11 : f32 to vector<16x32xf32>
      %19 = arith.mulf %18, %17 : vector<16x32xf32>
      %20 = vector.broadcast %12 : f32 to vector<16x32xf32>
      %21 = arith.addf %19, %20 : vector<16x32xf32>
      %22 = math.sin %21 : vector<16x32xf32>
      %23 = vector.broadcast %10 : f32 to vector<16x32xf32>
      %24 = arith.mulf %23, %22 : vector<16x32xf32>
      %25 = arith.addf %13, %24 : vector<16x32xf32>
      %26 = arith.truncf %25 : vector<16x32xf32> to vector<16x32xbf16>
      %c0_13 = arith.constant 0 : index
      %c0_14 = arith.constant 0 : index
      %27 = vector.load %arg4[%c0_13, %c0_14] : memref<32x16xbf16, #tpu.memory_space<vmem>>, vector<32x16xbf16>
      %cst_15 = arith.constant dense<0.000000e+00> : vector<16x16xf32>
      %28 = tpu.matmul %26, %27, %cst_15 {dimension_numbers = #tpu.dot_dimension_numbers<[1], [0], [0], [1], [0, 0, 1, 1], [], []>} : vector<16x32xbf16>, vector<32x16xbf16>, vector<16x16xf32> -> vector<16x16xf32>
      %c0_16 = arith.constant 0 : index
      %c0_17 = arith.constant 0 : index
      %29 = vector.load %arg5[%c0_16, %c0_17] : memref<1x16xf32, #tpu.memory_space<vmem>>, vector<1x16xf32>
      %30 = vector.broadcast %29 : vector<1x16xf32> to vector<16x16xf32>
      %31 = arith.addf %28, %30 : vector<16x16xf32>
      %cst_18 = arith.constant 0.000000e+00 : f32
      %32 = vector.broadcast %cst_18 : f32 to vector<16x16xf32>
      %33 = arith.maximumf %31, %32 : vector<16x16xf32>
      %34 = arith.truncf %33 : vector<16x16xf32> to vector<16x16xbf16>
      %c0_19 = arith.constant 0 : index
      %c0_20 = arith.constant 0 : index
      %35 = vector.load %arg9[%c0_19, %c0_20] : memref<16x16xbf16, #tpu.memory_space<vmem>>, vector<16x16xbf16>
      tpu.vector_store %arg9[%c0_19, %c0_20], %34 {strides = array<i32>} : memref<16x16xbf16, #tpu.memory_space<vmem>>, vector<16x16xbf16>,
    } else {
    }
    %c0 = arith.constant 0 : index
    %c0_1 = arith.constant 0 : index
    %3 = vector.load %arg9[%c0, %c0_1] : memref<16x16xbf16, #tpu.memory_space<vmem>>, vector<16x16xbf16>
    %c0_2 = arith.constant 0 : index
    %c0_3 = arith.constant 0 : index
    %4 = vector.load %arg6[%c0_2, %c0_3] : memref<16x128xbf16, #tpu.memory_space<vmem>>, vector<16x128xbf16>
    %cst = arith.constant dense<0.000000e+00> : vector<16x128xf32>
    %5 = tpu.matmul %3, %4, %cst {dimension_numbers = #tpu.dot_dimension_numbers<[1], [0], [0], [1], [0, 0, 1, 1], [], []>} : vector<16x16xbf16>, vector<16x128xbf16>, vector<16x128xf32> -> vector<16x128xf32>
    %c0_4 = arith.constant 0 : index
    %c0_5 = arith.constant 0 : index
    %6 = vector.load %arg7[%c0_4, %c0_5] : memref<1x128xf32, #tpu.memory_space<vmem>>, vector<1x128xf32>
    %7 = vector.broadcast %6 : vector<1x128xf32> to vector<16x128xf32>
    %8 = arith.addf %5, %7 : vector<16x128xf32>
    %c0_6 = arith.constant 0 : index
    %c0_7 = arith.constant 0 : index
    %9 = vector.load %arg8[%c0_6, %c0_7] : memref<16x128xf32, #tpu.memory_space<vmem>>, vector<16x128xf32>
    tpu.vector_store %arg8[%c0_6, %c0_7], %8 {strides = array<i32>} : memref<16x128xf32, #tpu.memory_space<vmem>>, vector<16x128xf32>,
    return
  }
  func.func @transform_0(%arg0: i32, %arg1: i32) -> i32 {
    %c0_i32 = arith.constant 0 : i32
    %c0_i32_0 = arith.constant 0 : i32
    return %c0_i32 : i32
  }
  func.func @transform_1(%arg0: i32, %arg1: i32) -> (i32, i32) {
    %c0_i32 = arith.constant 0 : i32
    %c0_i32_0 = arith.constant 0 : i32
    return %arg0, %c0_i32 : i32, i32
  }
  func.func @transform_2(%arg0: i32, %arg1: i32) -> (i32, i32) {
    %c0_i32 = arith.constant 0 : i32
    %c0_i32_0 = arith.constant 0 : i32
    %c0_i32_1 = arith.constant 0 : i32
    return %c0_i32, %c0_i32_0 : i32, i32
  }
  func.func @transform_3(%arg0: i32, %arg1: i32) -> (i32, i32) {
    %c0_i32 = arith.constant 0 : i32
    %c0_i32_0 = arith.constant 0 : i32
    %c0_i32_1 = arith.constant 0 : i32
    return %c0_i32, %c0_i32_0 : i32, i32
  }
  func.func @transform_4(%arg0: i32, %arg1: i32) -> (i32, i32) {
    %c0_i32 = arith.constant 0 : i32
    %c0_i32_0 = arith.constant 0 : i32
    return %c0_i32, %arg1 : i32, i32
  }
  func.func @transform_5(%arg0: i32, %arg1: i32) -> (i32, i32) {
    %c0_i32 = arith.constant 0 : i32
    %c0_i32_0 = arith.constant 0 : i32
    return %c0_i32, %arg1 : i32, i32
  }
  func.func @transform_6(%arg0: i32, %arg1: i32) -> (i32, i32) {
    %c0_i32 = arith.constant 0 : i32
    return %arg0, %arg1 : i32, i32
  }
}

</mosaic_0001>

<llo_original>
// kernel: tpu_custom_call.1
$region0: #{tpu_custom_call.1}
  #allocation0 [shape = 'u32[]', space=smem, size = 0x4, offset = 0x4, fixed_abs, tag = 'smem constant byte address 0x4 - core index']
  #allocation1 [shape = 'u32[72,128]{1,0:T(1,128)}', space=vmem, size = 0x9000, scoped, tag = 'internal scratch']
  #allocation2 [shape = 'bf16[16,16]{1,0:T(8,128)(2,1)}', space=vmem, size = 0x1000, scoped, tag = 'scratch operand']
  %s0 = inlined_call_operand.hbm [shape: f32[3], index: 0, kind: input, shape index: {}]
  %s1 = inlined_call_operand.vmem [shape: f32[16,32], index: 1, kind: input, shape index: {}]
  %s2 = inlined_call_operand.vmem [shape: bf16[32,16], index: 2, kind: input, shape index: {}]
  %s3 = inlined_call_operand.vmem [shape: f32[1,16], index: 3, kind: input, shape index: {}]
  %s4 = inlined_call_operand.vmem [shape: bf16[16,128], index: 4, kind: input, shape index: {}]
  %s5 = inlined_call_operand.vmem [shape: f32[1,128], index: 5, kind: input, shape index: {}]
  %s6 = inlined_call_operand.hbm [shape: f32[16,128], index: 6, kind: output, shape index: {}]
  %s7 = sld [smem:[#allocation0]]
  $region42: #{tpu_custom_call.1} parent=0
    _
  %s9 = ssub.s32 1, %s7
  %s10 = scalar_select 0, %s9, %s7
  $region1: #{tpu_custom_call.1} parent=0
    #allocation3 [shape = 'u8[512]{0}', space=smem, size = 0x200, scoped, tag = 'input window, operand 0, single buffered']
    #allocation4 [shape = 's32[1]{0}', space=sflag, size = 0x4, scoped, tag = 'scoped memory for tpu_custom_call.1']
    #allocation5 [shape = 's32[1]{0}', space=sflag, size = 0x4, scoped, tag = 'scoped memory for tpu_custom_call.1']
    #allocation6 [shape = 'u8[8192]{0}', space=vmem, size = 0x2000, scoped, tag = 'output window, operand 0, single buffered']
    %11 = vsyncpa [#allocation5], 0
    %12 = vsyncpa [#allocation4], 0
    // Predicated region
    $region2: #{tpu_custom_call.1} parent=1 // pred_check
      _
    $region3: #{tpu_custom_call.1} parent=1 // pred_check_branch
      %14 = sbr.rel (0) target = $region5
    $region4: #{tpu_custom_call.1} parent=1 // pred_region
      %16 = vsyncadd [#allocation5], 0
      %s18 = sshll.u32 %s0, 4
      %s19 = int_to_ptr.hbm [resolvable:$true] %s18
      %21 = dma.hbm_to_smem %s19, 16, [#allocation3], [#allocation5]
    $region5: #{tpu_custom_call.1} parent=1 // pred_fallthru
      _
    // Predicated region
    $region6: #{tpu_custom_call.1} parent=1 // pred_check
      _
    $region7: #{tpu_custom_call.1} parent=1 // pred_check_branch
      %23 = sbr.rel (0) target = $region9
    $region8: #{tpu_custom_call.1} parent=1 // pred_region
      _
    $region9: #{tpu_custom_call.1} parent=1 // pred_fallthru
      _
    // Predicated region
    $region10: #{tpu_custom_call.1} parent=1 // pred_check
      _
    $region11: #{tpu_custom_call.1} parent=1 // pred_check_branch
      %25 = sbr.rel (0) target = $region13
    $region12: #{tpu_custom_call.1} parent=1 // pred_region
      _
    $region13: #{tpu_custom_call.1} parent=1 // pred_fallthru
      _
    // Predicated region
    $region14: #{tpu_custom_call.1} parent=1 // pred_check
      _
    $region15: #{tpu_custom_call.1} parent=1 // pred_check_branch
      %27 = sbr.rel (0) target = $region17
    $region16: #{tpu_custom_call.1} parent=1 // pred_region
      _
    $region17: #{tpu_custom_call.1} parent=1 // pred_fallthru
      _
    // Predicated region
    $region18: #{tpu_custom_call.1} parent=1 // pred_check
      _
    $region19: #{tpu_custom_call.1} parent=1 // pred_check_branch
      %29 = sbr.rel (0) target = $region21
    $region20: #{tpu_custom_call.1} parent=1 // pred_region
      _
    $region21: #{tpu_custom_call.1} parent=1 // pred_fallthru
      _
    // Predicated region
    $region22: #{tpu_custom_call.1} parent=1 // pred_check
      _
    $region23: #{tpu_custom_call.1} parent=1 // pred_check_branch
      %31 = sbr.rel (0) target = $region25
    $region24: #{tpu_custom_call.1} parent=1 // pred_region
      _
    $region25: #{tpu_custom_call.1} parent=1 // pred_fallthru
      _
    // Predicated region
    $region26: #{tpu_custom_call.1} parent=1 // pred_check
      _
    $region27: #{tpu_custom_call.1} parent=1 // pred_check_branch
      %33 = sbr.rel (0) target = $region29
    $region28: #{tpu_custom_call.1} parent=1 // pred_region
      %35 = dma.done [#allocation5], 16
    $region29: #{tpu_custom_call.1} parent=1 // pred_fallthru
      _
    %36 = sfence
    %p38 = scmp.eq.s32.totalorder 0, 0
    // Predicated region
    $region30: #{tpu_custom_call.1} parent=1 // pred_check
      %p39 = pneg %p38
    $region31: #{tpu_custom_call.1} parent=1 // pred_check_branch
      %41 = sbr.rel (%p39) target = $region33
    $region32: #{tpu_custom_call.1} parent=1 // pred_region
      %s42 = sld [smem:[#allocation3]]
      %s43 = sld [smem:[#allocation3 + $0x1]]
      %s44 = sld [smem:[#allocation3 + $0x2]]
      %v45 = vld [vmem:[%s1] sm:$0xff]
      %v46 = vld [vmem:[%s1 + $0x8] sm:$0xff]
      %v47 = vmax.f32 %v45, 1e-06
      %v48 = vmax.f32 %v46, 1e-06
      %v49 = vmin.f32 %v47, 1000000.0
      %v50 = vmin.f32 %v48, 1000000.0
      %v51 = vstv %s43
      %v52 = vmul.f32 %v51, %v49
      %v53 = vmul.f32 %v51, %v50
      %v54 = vstv %s44
      %v55 = vadd.f32 %v52, %v54
      %v56 = vadd.f32 %v53, %v54
      %v57 = vand.u32 2147483647, %v55
      %vm58 = vcmp.le.f32.partialorder %v57, 0.7853982
      %vm59 = vcmp.lt.s32.totalorder %v55, 0
      %v60 = vand.u32 %v55, 2139095040
      %v61 = vshrl.u32 %v60, 23
      %v62 = vsub.s32 %v61, 127
      %v63 = vand.u32 2147483647, %v55
      %v64 = vand.u32 %v63, 8388607
      %v65 = vor.u32 %v64, 8388608
      %v66 = vsub.s32 0, %v65
      %v67 = vadd.s32 %v62, 1
      %vm68 = vcmp.gt.s32.totalorder %v67, 0
      %v69 = vsel %vm68, %v67, 0
      %v70 = vshrl.u32 %v69, 5
      %v71 = vand.u32 %v69, 31
      %v72 = vsub.s32 32, %v71
      %v73 = vshrl.u32 683565275, %v72
      %v74 = vshll.u32 683565275, %v71
      %v75 = vshrl.u32 2475754826, %v72
      %v76 = vor.u32 %v74, %v75
      %v77 = vshll.u32 2475754826, %v71
      %v78 = vshrl.u32 2131351028, %v72
      %v79 = vor.u32 %v77, %v78
      %v80 = vshll.u32 2131351028, %v71
      %v81 = vshrl.u32 2102212464, %v72
      %v82 = vor.u32 %v80, %v81
      %v83 = vshll.u32 2102212464, %v71
      %v84 = vshrl.u32 920167782, %v72
      %v85 = vor.u32 %v83, %v84
      %v86 = vshll.u32 920167782, %v71
      %v87 = vshrl.u32 1326507024, %v72
      %v88 = vor.u32 %v86, %v87
      %vm89 = vcmp.lt.s32.totalorder %v70, 1
      %vm90 = vcmp.lt.s32.totalorder %v70, 2
      %vm91 = vcmp.lt.s32.totalorder %v70, 3
      %vm92 = vcmp.lt.s32.totalorder %v70, 4
      %v93 = vsel %vm89, %v73, %v76
      %v94 = vsel %vm92, %v82, 2102212464
      %v95 = vsel %vm91, %v79, %v94
      %v96 = vsel %vm90, %v93, %v95
      %v97 = vsel %vm89, %v76, %v79
      %v98 = vsel %vm92, %v85, 920167782
      %v99 = vsel %vm91, %v82, %v98
      %v100 = vsel %vm90, %v97, %v99
      %v101 = vsel %vm89, %v79, %v82
      %v102 = vsel %vm92, %v88, 1326507024
      %v103 = vsel %vm91, %v85, %v102
      %v104 = vsel %vm90, %v101, %v103
      %v105 = vshll.u32 %v65, 8
      %v106 = vand.u32 %v105, 65535
      %v107 = vshrl.u32 %v105, 16
      %v108 = vand.u32 %v104, 65535
      %v109 = vshrl.u32 %v104, 16
      %v110 = vmul.u32 %v106, %v108
      %v111 = vmul.u32 %v106, %v109
      %v112 = vmul.u32 %v107, %v108
      %v113 = vmul.u32 %v107, %v109
      %v114 = vshll.u32 %v111, 16
      %v115 = vshrl.u32 %v111, 16
      %v116 = vshll.u32 %v112, 16
      %v117 = vshrl.u32 %v112, 16
      %vm118 = vc.u32 %v110, %v114
      %v119 = vsel %vm118, 1, 0
      %v120 = vadd.s32 %v110, %v114
      %v121 = vadd.s32 %v113, %v119
      %vm122 = vc.u32 %v120, %v116
      %v123 = vsel %vm122, 1, 0
      %v124 = vadd.s32 %v120, %v116
      %v125 = vadd.s32 %v121, %v123
      %v126 = vadd.s32 %v125, %v115
      %v127 = vadd.s32 %v126, %v117
      %v128 = vand.u32 %v105, 65535
      %v129 = vshrl.u32 %v105, 16
      %v130 = vand.u32 %v100, 65535
      %v131 = vshrl.u32 %v100, 16
      %v132 = vmul.u32 %v128, %v130
      %v133 = vmul.u32 %v128, %v131
      %v134 = vmul.u32 %v129, %v130
      %v135 = vmul.u32 %v129, %v131
      %v136 = vshll.u32 %v133, 16
      %v137 = vshrl.u32 %v133, 16
      %v138 = vshll.u32 %v134, 16
      %v139 = vshrl.u32 %v134, 16
      %vm140 = vc.u32 %v132, %v136
      %v141 = vsel %vm140, 1, 0
      %v142 = vadd.s32 %v132, %v136
      %v143 = vadd.s32 %v135, %v141
      %vm144 = vc.u32 %v142, %v138
      %v145 = vsel %vm144, 1, 0
      %v146 = vadd.s32 %v142, %v138
      %v147 = vadd.s32 %v143, %v145
      %v148 = vadd.s32 %v147, %v137
      %v149 = vadd.s32 %v148, %v139
      %v150 = vmul.u32 %v105, %v96
      %v151 = vadd.s32 %v127, %v146
      %vm152 = vc.u32 %v127, %v146
      %v153 = vadd.s32 %v149, 1
      %v154 = vsel %vm152, %v153, %v149
      %v155 = vadd.s32 %v150, %v154
      %v156 = vadd.s32 %v155, 536870912
      %v157 = vshrl.u32 %v156, 30
      %v158 = vshll.u32 %v157, 30
      %v159 = vsub.s32 %v155, %v158
      %vm160 = vcmp.lt.s32.totalorder %v159, 0
      %v161 = vsub.s32 0, %v159
      %v162 = vsel %vm160, %v161, %v159
      %v163 = vclz %v162
      %v164 = vsub.s32 %v163, 2
      %vm165 = vcmp.gt.s32.totalorder 0, %v164
      %v166 = vsel %vm165, 0, %v164
      %v167 = vsub.s32 32, %v166
      %v168 = vshll.u32 %v159, %v166
      %v169 = vshrl.u32 %v151, %v167
      %v170 = vor.u32 %v168, %v169
      %v171 = vsub.s32 4294967266, %v166
      %v172 = vadd.s32 %v171, 127
      %v173 = vshll.u32 %v172, 23
      %v174 = vor.u32 4788187, %v173
      %v175 = vand.u32 2147483647, %v174
      %v177 = vcvt.s32.f32 %v170
      %v178 = vmul.f32 %v177, %v175
      %v179 = vxor.u32 %v178, 2147483648
      %v180 = vsel %vm59, %v179, %v178
      %v181 = vsub.s32 4, %v157
      %v182 = vsel %vm59, %v181, %v157
      %v183 = vsel %vm58, %v55, %v180
      %v184 = vsel %vm58, 0, %v182
      %v185 = vmul.f32 %v183, %v183
      %v186 = vmul.f32 %v185, -0.001358992
      %v187 = vadd.f32 %v186, 0.041655596
      %v188 = vmul.f32 %v185, %v187
      %v189 = vadd.f32 %v188, -0.4999988
      %v190 = vmul.f32 %v185, %v189
      %v191 = vadd.f32 1.0, %v190
      %v192 = vmul.f32 %v183, %v183
      %v193 = vmul.f32 %v192, -0.00019511016
      %v194 = vadd.f32 %v193, 0.008332121
      %v195 = vmul.f32 %v192, %v194
      %v196 = vadd.f32 %v195, -0.16666654
      %v197 = vmul.f32 %v192, %v196
      %v198 = vadd.f32 %v197, 1.0
      %v199 = vmul.f32 %v198, %v183
      %vm200 = vweird.f32 %v55
      %v201 = vadd.s32 %v184, 3
      %v202 = vand.u32 %v201, 3
      %vm203 = vcmp.lt.s32.totalorder %v202, 2
      %vm204 = vcmp.eq.s32.totalorder %v202, 0
      %v205 = vxor.u32 %v199, 2147483648
      %v206 = vsel %vm204, %v191, %v205
      %vm207 = vcmp.eq.s32.totalorder %v202, 2
      %v208 = vxor.u32 %v191, 2147483648
      %v209 = vsel %vm207, %v208, %v199
      %v210 = vsel %vm203, %v206, %v209
      %v211 = vsel %vm200, nan, %v210
      %v212 = vand.u32 2147483647, %v56
      %vm213 = vcmp.le.f32.partialorder %v212, 0.7853982
      %vm214 = vcmp.lt.s32.totalorder %v56, 0
      %v215 = vand.u32 %v56, 2139095040
      %v216 = vshrl.u32 %v215, 23
      %v217 = vsub.s32 %v216, 127
      %v218 = vand.u32 2147483647, %v56
      %v219 = vand.u32 %v218, 8388607
      %v220 = vor.u32 %v219, 8388608
      %v221 = vsub.s32 0, %v220
      %v222 = vadd.s32 %v217, 1
      %vm223 = vcmp.gt.s32.totalorder %v222, 0
      %v224 = vsel %vm223, %v222, 0
      %v225 = vshrl.u32 %v224, 5
      %v226 = vand.u32 %v224, 31
      %v227 = vsub.s32 32, %v226
      %v228 = vshrl.u32 683565275, %v227
      %v229 = vshll.u32 683565275, %v226
      %v230 = vshrl.u32 2475754826, %v227
      %v231 = vor.u32 %v229, %v230
      %v232 = vshll.u32 2475754826, %v226
      %v233 = vshrl.u32 2131351028, %v227
      %v234 = vor.u32 %v232, %v233
      %v235 = vshll.u32 2131351028, %v226
      %v236 = vshrl.u32 2102212464, %v227
      %v237 = vor.u32 %v235, %v236
      %v238 = vshll.u32 2102212464, %v226
      %v239 = vshrl.u32 920167782, %v227
      %v240 = vor.u32 %v238, %v239
      %v241 = vshll.u32 920167782, %v226
      %v242 = vshrl.u32 1326507024, %v227
      %v243 = vor.u32 %v241, %v242
      %vm244 = vcmp.lt.s32.totalorder %v225, 1
      %vm245 = vcmp.lt.s32.totalorder %v225, 2
      %vm246 = vcmp.lt.s32.totalorder %v225, 3
      %vm247 = vcmp.lt.s32.totalorder %v225, 4
      %v248 = vsel %vm244, %v228, %v231
      %v249 = vsel %vm247, %v237, 2102212464
      %v250 = vsel %vm246, %v234, %v249
      %v251 = vsel %vm245, %v248, %v250
      %v252 = vsel %vm244, %v231, %v234
      %v253 = vsel %vm247, %v240, 920167782
      %v254 = vsel %vm246, %v237, %v253
      %v255 = vsel %vm245, %v252, %v254
      %v256 = vsel %vm244, %v234, %v237
      %v257 = vsel %vm247, %v243, 1326507024
      %v258 = vsel %vm246, %v240, %v257
      %v259 = vsel %vm245, %v256, %v258
      %v260 = vshll.u32 %v220, 8
      %v261 = vand.u32 %v260, 65535
      %v262 = vshrl.u32 %v260, 16
      %v263 = vand.u32 %v259, 65535
      %v264 = vshrl.u32 %v259, 16
      %v265 = vmul.u32 %v261, %v263
      %v266 = vmul.u32 %v261, %v264
      %v267 = vmul.u32 %v262, %v263
      %v268 = vmul.u32 %v262, %v264
      %v269 = vshll.u32 %v266, 16
      %v270 = vshrl.u32 %v266, 16
      %v271 = vshll.u32 %v267, 16
      %v272 = vshrl.u32 %v267, 16
      %vm273 = vc.u32 %v265, %v269
      %v274 = vsel %vm273, 1, 0
      %v275 = vadd.s32 %v265, %v269
      %v276 = vadd.s32 %v268, %v274
      %vm277 = vc.u32 %v275, %v271
      %v278 = vsel %vm277, 1, 0
      %v279 = vadd.s32 %v275, %v271
      %v280 = vadd.s32 %v276, %v278
      %v281 = vadd.s32 %v280, %v270
      %v282 = vadd.s32 %v281, %v272
      %v283 = vand.u32 %v260, 65535
      %v284 = vshrl.u32 %v260, 16
      %v285 = vand.u32 %v255, 65535
      %v286 = vshrl.u32 %v255, 16
      %v287 = vmul.u32 %v283, %v285
      %v288 = vmul.u32 %v283, %v286
      %v289 = vmul.u32 %v284, %v285
      %v290 = vmul.u32 %v284, %v286
      %v291 = vshll.u32 %v288, 16
      %v292 = vshrl.u32 %v288, 16
      %v293 = vshll.u32 %v289, 16
      %v294 = vshrl.u32 %v289, 16
      %vm295 = vc.u32 %v287, %v291
      %v296 = vsel %vm295, 1, 0
      %v297 = vadd.s32 %v287, %v291
      %v298 = vadd.s32 %v290, %v296
      %vm299 = vc.u32 %v297, %v293
      %v300 = vsel %vm299, 1, 0
      %v301 = vadd.s32 %v297, %v293
      %v302 = vadd.s32 %v298, %v300
      %v303 = vadd.s32 %v302, %v292
      %v304 = vadd.s32 %v303, %v294
      %v305 = vmul.u32 %v260, %v251
      %v306 = vadd.s32 %v282, %v301
      %vm307 = vc.u32 %v282, %v301
      %v308 = vadd.s32 %v304, 1
      %v309 = vsel %vm307, %v308, %v304
      %v310 = vadd.s32 %v305, %v309
      %v311 = vadd.s32 %v310, 536870912
      %v312 = vshrl.u32 %v311, 30
      %v313 = vshll.u32 %v312, 30
      %v314 = vsub.s32 %v310, %v313
      %vm315 = vcmp.lt.s32.totalorder %v314, 0
      %v316 = vsub.s32 0, %v314
      %v317 = vsel %vm315, %v316, %v314
      %v318 = vclz %v317
      %v319 = vsub.s32 %v318, 2
      %vm320 = vcmp.gt.s32.totalorder 0, %v319
      %v321 = vsel %vm320, 0, %v319
      %v322 = vsub.s32 32, %v321
      %v323 = vshll.u32 %v314, %v321
      %v324 = vshrl.u32 %v306, %v322
      %v325 = vor.u32 %v323, %v324
      %v326 = vsub.s32 4294967266, %v321
      %v327 = vadd.s32 %v326, 127
      %v328 = vshll.u32 %v327, 23
      %v329 = vor.u32 4788187, %v328
      %v330 = vand.u32 2147483647, %v329
      %v332 = vcvt.s32.f32 %v325
      %v333 = vmul.f32 %v332, %v330
      %v334 = vxor.u32 %v333, 2147483648
      %v335 = vsel %vm214, %v334, %v333
      %v336 = vsub.s32 4, %v312
      %v337 = vsel %vm214, %v336, %v312
      %v338 = vsel %vm213, %v56, %v335
      %v339 = vsel %vm213, 0, %v337
      %v340 = vmul.f32 %v338, %v338
      %v341 = vmul.f32 %v340, -0.001358992
      %v342 = vadd.f32 %v341, 0.041655596
      %v343 = vmul.f32 %v340, %v342
      %v344 = vadd.f32 %v343, -0.4999988
      %v345 = vmul.f32 %v340, %v344
      %v346 = vadd.f32 1.0, %v345
      %v347 = vmul.f32 %v338, %v338
      %v348 = vmul.f32 %v347, -0.00019511016
      %v349 = vadd.f32 %v348, 0.008332121
      %v350 = vmul.f32 %v347, %v349
      %v351 = vadd.f32 %v350, -0.16666654
      %v352 = vmul.f32 %v347, %v351
      %v353 = vadd.f32 %v352, 1.0
      %v354 = vmul.f32 %v353, %v338
      %vm355 = vweird.f32 %v56
      %v356 = vadd.s32 %v339, 3
      %v357 = vand.u32 %v356, 3
      %vm358 = vcmp.lt.s32.totalorder %v357, 2
      %vm359 = vcmp.eq.s32.totalorder %v357, 0
      %v360 = vxor.u32 %v354, 2147483648
      %v361 = vsel %vm359, %v346, %v360
      %vm362 = vcmp.eq.s32.totalorder %v357, 2
      %v363 = vxor.u32 %v346, 2147483648
      %v364 = vsel %vm362, %v363, %v354
      %v365 = vsel %vm358, %v361, %v364
      %v366 = vsel %vm355, nan, %v365
      %v367 = vstv %s42
      %v368 = vmul.f32 %v367, %v211
      %v369 = vmul.f32 %v367, %v366
      %v370 = vadd.f32 %v45, %v368
      %v371 = vadd.f32 %v46, %v369
      %v372 = vpack.c.bf16 %v371, %v370
      %v373 = vld [vmem:[%s2] sm:$0xf]
      %v374 = vld [vmem:[%s2 + $0x4] sm:$0xf]
      %v375 = vld [vmem:[%s2 + $0x8] sm:$0xf]
      %v376 = vld [vmem:[%s2 + $0xc] sm:$0xf]
      %v377 = vld [vmem:[%s3] sm:$0x1]
      %v379 = vperm.slane %v377, 0
      %v385 = vunpack.c.l.b16 %v373
      %v386 = vunpack.c.l.b16 %v374
      %v387 = vunpack.c.l.b16 %v375
      %v388 = vunpack.c.l.b16 %v376
      %v389 = vpack.c.b16 %v386, %v385
      %v390 = vpack.c.b16 %v388, %v387
      %vm393 = vcmask 261120
      %v395 = vsel %vm393, %v372, 0
      %397 = vmatpush.bf16.msra.mxu0 0
      %398 = vmatpush.bf16.msra.mxu0 0
      %399 = vmatpush.bf16.msra.mxu0 0
      %400 = vmatpush.bf16.msra.mxu0 0
      %401 = vmatpush.bf16.msra.mxu0 0
      %402 = vmatpush.bf16.msra.mxu0 0
      %403 = vmatpush.bf16.msra.mxu0 %v390
      %404 = vmatpush.bf16.msra.mxu0 %v389
      %405 = vmatmul.bf16.gmra.mxu0 %v395
      %v406 = vpop.f32.mrf.mxu0
      %v407 = vadd.f32 %v379, %v406
      %v408 = vpop.f32.mrf.mxu0
      %v409 = vadd.f32 %v379, %v408
      %410 = vdwg.mxu0
      %v411 = vmax.f32 %v407, 0.0
      %v412 = vmax.f32 %v409, 0.0
      %v413 = vpack.c.bf16 %v411, %v411
      %v414 = vpack.c.bf16 %v412, %v412
      %vm415 = vcmask 125952
      %416 = vst.msk [vmem:[#allocation2] sm:$0xf] %vm415, %v413
      %417 = vst.msk [vmem:[#allocation2 + $0x4] sm:$0xf] %vm415, %v414
    $region33: #{tpu_custom_call.1} parent=1 // pred_fallthru
      _
    %v418 = vld [vmem:[#allocation2] sm:$0xf]
    %v419 = vld [vmem:[#allocation2 + $0x4] sm:$0xf]
    %v420 = vld [vmem:[%s4] sm:$0xf]
    %v421 = vld [vmem:[%s4 + $0x4] sm:$0xf]
    %v422 = vld [vmem:[%s5] sm:$0x1]
    %v424 = vperm.slane %v422, 0
    %v428 = vunpack.c.l.b16 %v418
    %v429 = vunpack.c.l.b16 %v419
    %v430 = vpack.c.b16 %v429, %v428
    %v433 = vunpack.c.l.b16 %v420
    %v434 = vunpack.c.l.b16 %v421
    %v435 = vpack.c.b16 %v434, %v433
    %vm437 = vcmask 130048
    %v439 = vsel %vm437, %v430, 0
    %441 = vmatpush.bf16.msra.mxu0 0
    %442 = vmatpush.bf16.msra.mxu0 0
    %443 = vmatpush.bf16.msra.mxu0 0
    %444 = vmatpush.bf16.msra.mxu0 0
    %445 = vmatpush.bf16.msra.mxu0 0
    %446 = vmatpush.bf16.msra.mxu0 0
    %447 = vmatpush.bf16.msra.mxu0 0
    %448 = vmatpush.bf16.msra.mxu0 %v435
    %449 = vmatmul.bf16.gmra.mxu0 %v439
    %v450 = vpop.f32.mrf.mxu0
    %v451 = vadd.f32 %v424, %v450
    %v452 = vpop.f32.mrf.mxu0
    %v453 = vadd.f32 %v424, %v452
    %454 = vdwg.mxu0
    %455 = vst [vmem:[#allocation6] sm:$0xff] %v451
    %456 = vst [vmem:[#allocation6 + $0x8] sm:$0xff] %v453
    // Predicated region
    $region34: #{tpu_custom_call.1} parent=1 // pred_check
      _
    $region35: #{tpu_custom_call.1} parent=1 // pred_check_branch
      %458 = sbr.rel (0) target = $region37
    $region36: #{tpu_custom_call.1} parent=1 // pred_region
      %460 = vsyncadd [#allocation4], 0
      %s461 = sshll.u32 [#allocation6], 4
      %s462 = int_to_ptr.vmem [resolvable:$true] %s461
      %s463 = sshll.u32 %s6, 4
      %s464 = int_to_ptr.hbm [resolvable:$true] %s463
      %469 = dma.vmem_to_hbm [thread:$0]  %s462, 256, %s464, [#allocation4], 128, 128, 8
    $region37: #{tpu_custom_call.1} parent=1 // pred_fallthru
      _
    // Predicated region
    $region38: #{tpu_custom_call.1} parent=1 // pred_check
      _
    $region39: #{tpu_custom_call.1} parent=1 // pred_check_branch
      %471 = sbr.rel (0) target = $region41
    $region40: #{tpu_custom_call.1} parent=1 // pred_region
      %473 = dma.done [#allocation4], 256
    $region41: #{tpu_custom_call.1} parent=1 // pred_fallthru
      _
    %474 = vsyncpa [#allocation4], 1
    %475 = vsyncpa [#allocation5], 1

</llo_original>
